<compile_context>
chip_gen: v7x
topology: tpu7x:2x2x1
jax: 0.10.0
libtpu: 0.0.40
codegen_flags: <defaults>
</compile_context>

<pallas_src>
import numpy as np
import jax
import jax.numpy as jnp
from jax import lax
from jax.experimental import pallas as pl
from jax.experimental.pallas import tpu as pltpu

EPS = 1e-3           # Charbonnier smoothing
LAMBDA_FREQ = 0.5    # weight on the frequency loss
_KRON_MAX_ELEMS = 1024   # single-matmul Kronecker DFT path up to this H*W


def _round_up(x, m):
    return ((x + m - 1) // m) * m


def _cdiv(a, b):
    return -(-a // b)


def _vmem_capacity_bytes():
    # Physical VMEM per TensorCore (v5e/v6e: 128 MiB, v7x: 64 MiB).  Host-side
    # query only; fall back to the smallest generation if unavailable.  (This
    # try/except cannot mask kernel compile/runtime errors.)
    try:
        return int(pltpu.get_tpu_info().vmem_capacity_bytes)
    except Exception:
        return 64 << 20


def _hermitian_col_weights(W):
    # Real-input FFT column weights so the weighted half-spectrum |.| sum
    # equals the full-spectrum sum exactly (1 for DC/Nyquist, 2 otherwise).
    v = np.arange(W // 2 + 1)
    return np.where((v == 0) | (2 * v == W), 1.0, 2.0)


def _kron_dft_matrix(H, W):
    """(H*W, Ncols) matrix K such that, for a row-major flattened real image d,
    d_flat @ K = [w_v * Re FFT2(d) half-spectrum || w_v * Im FFT2(d) ...],
    zero-padded on the right to a lane-dense multiple of 128 columns."""
    Wh = W // 2 + 1
    ang_h = -2.0 * np.pi * np.outer(np.arange(H), np.arange(H)) / H      # (h, u)
    ang_w = -2.0 * np.pi * np.outer(np.arange(W), np.arange(Wh)) / W     # (w, v)
    ang = ang_h[:, None, :, None] + ang_w[None, :, None, :]              # (h,w,u,v)
    col_w = _hermitian_col_weights(W)
    kr = (np.cos(ang) * col_w).reshape(H * W, H * Wh)
    ki = (np.sin(ang) * col_w).reshape(H * W, H * Wh)
    K = np.concatenate([kr, ki], axis=1)
    ncols = _round_up(K.shape[1], 128)
    K = np.pad(K, ((0, 0), (0, ncols - K.shape[1])))
    return K.astype(np.float32)


def _sep_dft_constants(H, W):
    """Separable-path constants: Hermitian-weighted, lane-padded W-side cos/sin
    and (symmetric) H-side cos/sin plus their sum for the Karatsuba product."""
    Wh = W // 2 + 1
    Whp = _round_up(Wh, 128)
    ang_w = -2.0 * np.pi * np.outer(np.arange(W), np.arange(Wh)) / W
    col_w = _hermitian_col_weights(W)
    cw = np.zeros((W, Whp), np.float32)
    sw = np.zeros((W, Whp), np.float32)
    cw[:, :Wh] = np.cos(ang_w) * col_w
    sw[:, :Wh] = np.sin(ang_w) * col_w
    ang_h = -2.0 * np.pi * np.outer(np.arange(H), np.arange(H)) / H
    ch = np.cos(ang_h).astype(np.float32)
    sh = np.sin(ang_h).astype(np.float32)
    return cw, sw, ch, sh, (ch + sh).astype(np.float32)


def _make_kron_kernel(eps):
    eps2 = np.float32(eps) * np.float32(eps)

    def kernel(pred_ref, targ_ref, k_ref, out_ref, acc_c, acc_f):
        step = pl.program_id(1)

        @pl.when(step == 0)
        def _init():
            acc_c[...] = jnp.zeros_like(acc_c)
            acc_f[...] = jnp.zeros_like(acc_f)

        # (tile_b, H*W) block of flattened image differences.
        d = pred_ref[...].astype(jnp.float32) - targ_ref[...].astype(jnp.float32)

        # Charbonnier partial: axis-0 (elementwise across vreg rows) reduce
        # only; the cross-lane reduce is deferred to the last grid step.
        acc_c[...] += jnp.sum(jnp.sqrt(d * d + eps2), axis=0, keepdims=True)

        # Whole 2D half-spectrum of the batch as ONE MXU matmul.
        y = jnp.dot(d, k_ref[...], preferred_element_type=jnp.float32)
        acc_f[...] += jnp.sum(jnp.abs(y), axis=0, keepdims=True)

        @pl.when(step == pl.num_programs(1) - 1)
        def _flush():
            cs = jnp.sum(acc_c[...])
            fs = jnp.sum(acc_f[...])
            lane = lax.broadcasted_iota(jnp.int32, (1, 2), 1)
            out_ref[...] = jnp.where(lane == 0, cs, fs)

    return kernel


def _make_sep_kernel(eps, tile_b, H, Whp):
    eps2 = np.float32(eps) * np.float32(eps)

    def kernel(pred_ref, targ_ref, cw_ref, sw_ref, ch_ref, sh_ref, chsh_ref,
               out_ref, acc_c, acc_f):
        step = pl.program_id(1)

        @pl.when(step == 0)
        def _init():
            acc_c[...] = jnp.zeros_like(acc_c)
            acc_f[...] = jnp.zeros_like(acc_f)

        # (tile_b*H, W) block of image differences.
        d = pred_ref[...].astype(jnp.float32) - targ_ref[...].astype(jnp.float32)
        acc_c[...] += jnp.sum(jnp.sqrt(d * d + eps2), axis=0, keepdims=True)

        # W-side DFT of the whole batch (weighted, lane-padded half spectrum).
        tr = jnp.dot(d, cw_ref[...], preferred_element_type=jnp.float32)
        ti = jnp.dot(d, sw_ref[...], preferred_element_type=jnp.float32)

        # H-side DFT as big (tile_b*Whp, H) @ (H, H) matmuls: one transpose so
        # the batch*spectrum extent lands on the M side, then the symmetric
        # ch/sh applied from the right.  Karatsuba 3-multiply complex product.
        trT = jnp.swapaxes(tr.reshape(tile_b, H, Whp), 1, 2).reshape(tile_b * Whp, H)
        tiT = jnp.swapaxes(ti.reshape(tile_b, H, Whp), 1, 2).reshape(tile_b * Whp, H)
        m1 = jnp.dot(trT, ch_ref[...], preferred_element_type=jnp.float32)
        m2 = jnp.dot(tiT, sh_ref[...], preferred_element_type=jnp.float32)
        m3 = jnp.dot(trT + tiT, chsh_ref[...], preferred_element_type=jnp.float32)
        yr = m1 - m2           # weighted Re FFT2(d), transposed
        yi = m3 - m1 - m2      # weighted Im FFT2(d), transposed
        acc_f[...] += jnp.sum(jnp.abs(yr) + jnp.abs(yi), axis=0, keepdims=True)

        @pl.when(step == pl.num_programs(1) - 1)
        def _flush():
            cs = jnp.sum(acc_c[...])
            fs = jnp.sum(acc_f[...])
            lane = lax.broadcasted_iota(jnp.int32, (1, 2), 1)
            out_ref[...] = jnp.where(lane == 0, cs, fs)

    return kernel


def _plan_tiles(n_img, per_img_bytes, step_budget):
    """Pick images-per-block (multiple of 8), tile count and chunk count."""
    tile_b = max(8, step_budget // max(per_img_bytes, 1))
    tile_b = min(tile_b, _round_up(n_img, 8))
    if n_img >= 16:
        # Keep >= 2 tiles so the leading "parallel" axis can split across the
        # two v7x TensorCores (harmless single-core elsewhere).
        tile_b = min(tile_b, _round_up(_cdiv(n_img, 2), 8))
    tile_b = max(8, _round_up(tile_b, 8))
    n_tiles = _cdiv(n_img, tile_b)
    if n_tiles >= 2:
        n_tiles = _round_up(n_tiles, 2)
        n_chunks = 2
    else:
        n_chunks = 1            # trivially small inputs: one tile, one chunk
    return tile_b, n_tiles, n_chunks


def rbsformer_loss(pred, target, eps=EPS, lambda_freq=LAMBDA_FREQ):
    B, C, H, W = pred.shape
    n_img = B * C
    HW = H * W
    N = B * C * H * W

    cap = _vmem_capacity_bytes()
    budget = (cap * 3) // 4          # leave headroom for Mosaic scratch etc.

    use_kron = HW <= _KRON_MAX_ELEMS

    if use_kron:
        K = jnp.asarray(_kron_dft_matrix(H, W))
        ncols = K.shape[1]
        const_bytes = int(K.size) * 4
        per_img_bytes = 4 * (6 * HW + 2 * ncols)
    else:
        # TODO(synk): for very large W the resident W-side DFT matrices can
        # outgrow VMEM; they would need their own K-side tiling.
        cw, sw, ch, sh, chsh = (jnp.asarray(a) for a in _sep_dft_constants(H, W))
        Whp = cw.shape[1]
        const_bytes = 4 * (2 * W * Whp + 3 * H * H)
        per_img_bytes = 4 * (6 * HW + 8 * H * Whp)

    tile_b, n_tiles, n_chunks = _plan_tiles(n_img, per_img_bytes, budget // 2)
    tiles_per_chunk = n_tiles // n_chunks
    padded_imgs = n_tiles * tile_b
    pad_imgs = padded_imgs - n_img

    vmem_limit = int(min(budget,
                         max(32 << 20,
                             per_img_bytes * tile_b + const_bytes + (4 << 20))))

    params = pltpu.CompilerParams(
        dimension_semantics=("parallel", "arbitrary"),
        vmem_limit_bytes=vmem_limit)
    out_shape = jax.ShapeDtypeStruct((n_chunks, 1, 2), jnp.float32)
    out_spec = pl.BlockSpec((None, 1, 2), lambda c, i: (c, 0, 0))
    # Grid-invariant DFT constants: whole-array VMEM residents (single copy).
    const_spec = pl.BlockSpec(memory_space=pltpu.MemorySpace.VMEM)

    if use_kron:
        p2 = pred.reshape(n_img, HW)
        t2 = target.reshape(n_img, HW)
        if pad_imgs:
            p2 = jnp.pad(p2, ((0, pad_imgs), (0, 0)))
            t2 = jnp.pad(t2, ((0, pad_imgs), (0, 0)))
        img_spec = pl.BlockSpec((tile_b, HW),
                                lambda c, i: (c * tiles_per_chunk + i, 0))
        partials = pl.pallas_call(
            _make_kron_kernel(float(eps)),
            out_shape=out_shape,
            grid=(n_chunks, tiles_per_chunk),
            in_specs=[img_spec, img_spec, const_spec],
            out_specs=out_spec,
            scratch_shapes=[pltpu.VMEM((1, HW), jnp.float32),
                            pltpu.VMEM((1, ncols), jnp.float32)],
            compiler_params=params,
        )(p2, t2, K)
    else:
        p2 = pred.reshape(n_img * H, W)
        t2 = target.reshape(n_img * H, W)
        if pad_imgs:
            p2 = jnp.pad(p2, ((0, pad_imgs * H), (0, 0)))
            t2 = jnp.pad(t2, ((0, pad_imgs * H), (0, 0)))
        img_spec = pl.BlockSpec((tile_b * H, W),
                                lambda c, i: (c * tiles_per_chunk + i, 0))
        partials = pl.pallas_call(
            _make_sep_kernel(float(eps), tile_b, H, Whp),
            out_shape=out_shape,
            grid=(n_chunks, tiles_per_chunk),
            in_specs=[img_spec, img_spec] + [const_spec] * 5,
            out_specs=out_spec,
            scratch_shapes=[pltpu.VMEM((1, W), jnp.float32),
                            pltpu.VMEM((1, H), jnp.float32)],
            compiler_params=params,
        )(p2, t2, cw, sw, ch, sh, chsh)

    char_total = jnp.sum(partials[:, 0, 0])
    freq_total = jnp.sum(partials[:, 0, 1])

    # Zero-padded images contribute exactly sqrt(eps^2) per element to the
    # Charbonnier sum and nothing to the frequency sum; remove analytically.
    if pad_imgs:
        eps_f32 = float(np.sqrt(np.float32(eps) * np.float32(eps)))
        char_total = char_total - np.float32(pad_imgs * HW) * np.float32(eps_f32)

    inv_n = np.float32(1.0 / N)
    return (char_total * inv_n
            + np.float32(0.5 * float(lambda_freq)) * freq_total * inv_n)


def ref_loss(pred, target, eps=EPS, lambda_freq=LAMBDA_FREQ):
    """Pure-JAX reference mirroring the PyTorch module."""
    d = pred - target
    char = jnp.mean(jnp.sqrt(d * d + eps * eps))
    pf = jnp.fft.fft2(pred.astype(jnp.float32))
    tf = jnp.fft.fft2(target.astype(jnp.float32))
    loss_real = jnp.mean(jnp.abs(pf.real - tf.real))
    loss_imag = jnp.mean(jnp.abs(pf.imag - tf.imag))
    return char + lambda_freq * (loss_real + loss_imag) / 2.0


if __name__ == "__main__":
    key = jax.random.PRNGKey(0)
    k1, k2 = jax.random.split(key)
    B, C, H, W = 2, 4, 16, 16
    pred = jax.random.normal(k1, (B, C, H, W), dtype=jnp.float32)
    target = jax.random.normal(k2, (B, C, H, W), dtype=jnp.float32)

    loss_fn = jax.jit(rbsformer_loss)
    out = jax.block_until_ready(loss_fn(pred, target))

    ref = float(ref_loss(pred, target))
    assert abs(float(out) - ref) < 1e-3 * max(1.0, abs(ref)), (float(out), ref)
    print("KERNEL_OK")
</pallas_src>

<mosaic_0001>
module attributes {stable_mosaic.version = 11 : i64} {
  func.func @kernel(%arg0: i32, %arg1: i32, %arg2: memref<8x256xf32, #tpu.memory_space<vmem>>, %arg3: memref<8x256xf32, #tpu.memory_space<vmem>>, %arg4: memref<256x384xf32, #tpu.memory_space<vmem>>, %arg5: memref<1x1x2xf32, #tpu.memory_space<vmem>>, %arg6: memref<1x256xf32, #tpu.memory_space<vmem>>, %arg7: memref<1x384xf32, #tpu.memory_space<vmem>>) attributes {dimension_semantics = [#tpu.dimension_semantics<parallel>, #tpu.dimension_semantics<arbitrary>], iteration_bounds = array<i64: 1, 1>, scalar_prefetch = 0 : i64, scratch_operands = 2 : i64, tpu.core_type = #tpu.core_type<tc>, window_params = [{transform_indices = @transform_0, window_bounds = array<i64: 8, 256>}, {transform_indices = @transform_1, window_bounds = array<i64: 8, 256>}, {pipeline_mode = #tpu.pipeline_mode<synchronous>, transform_indices = @transform_2, window_bounds = array<i64: 256, 384>}, {transform_indices = @transform_3, window_bounds = array<i64: 1, 1, 2>}]} {
    %c0_i32 = arith.constant 0 : i32
    %0 = arith.cmpi eq, %arg1, %c0_i32 : i32
    %1 = arith.extui %0 : i1 to i32
    %c0_i32_0 = arith.constant 0 : i32
    %2 = arith.cmpi ne, %1, %c0_i32_0 : i32
    scf.if %2 {
      %cst_19 = arith.constant 0.000000e+00 : f32
      %26 = vector.broadcast %cst_19 : f32 to vector<1x256xf32>
      %c0_20 = arith.constant 0 : index
      %c0_21 = arith.constant 0 : index
      %27 = vector.load %arg6[%c0_20, %c0_21] : memref<1x256xf32, #tpu.memory_space<vmem>>, vector<1x256xf32>
      tpu.vector_store %arg6[%c0_20, %c0_21], %26 {strides = array<i32>} : memref<1x256xf32, #tpu.memory_space<vmem>>, vector<1x256xf32>,
      %cst_22 = arith.constant 0.000000e+00 : f32
      %28 = vector.broadcast %cst_22 : f32 to vector<1x384xf32>
      %c0_23 = arith.constant 0 : index
      %c0_24 = arith.constant 0 : index
      %29 = vector.load %arg7[%c0_23, %c0_24] : memref<1x384xf32, #tpu.memory_space<vmem>>, vector<1x384xf32>
      tpu.vector_store %arg7[%c0_23, %c0_24], %28 {strides = array<i32>} : memref<1x384xf32, #tpu.memory_space<vmem>>, vector<1x384xf32>,
    } else {
    }
    %c0 = arith.constant 0 : index
    %c0_1 = arith.constant 0 : index
    %3 = vector.load %arg2[%c0, %c0_1] : memref<8x256xf32, #tpu.memory_space<vmem>>, vector<8x256xf32>
    %c0_2 = arith.constant 0 : index
    %c0_3 = arith.constant 0 : index
    %4 = vector.load %arg3[%c0_2, %c0_3] : memref<8x256xf32, #tpu.memory_space<vmem>>, vector<8x256xf32>
    %5 = arith.subf %3, %4 : vector<8x256xf32>
    %c0_4 = arith.constant 0 : index
    %c0_5 = arith.constant 0 : index
    %6 = vector.load %arg6[%c0_4, %c0_5] : memref<1x256xf32, #tpu.memory_space<vmem>>, vector<1x256xf32>
    %7 = arith.mulf %5, %5 : vector<8x256xf32>
    %cst = arith.constant 1.00000011E-6 : f32
    %8 = vector.broadcast %cst : f32 to vector<8x256xf32>
    %9 = arith.addf %7, %8 : vector<8x256xf32>
    %10 = math.sqrt %9 : vector<8x256xf32>
    %cst_6 = arith.constant dense<0.000000e+00> : vector<256xf32>
    %11 = vector.multi_reduction <add>, %10, %cst_6 [0] : vector<8x256xf32> to vector<256xf32>
    %12 = vector.shape_cast %11 : vector<256xf32> to vector<1x256xf32>
    %13 = arith.addf %6, %12 : vector<1x256xf32>
    %c0_7 = arith.constant 0 : index
    %c0_8 = arith.constant 0 : index
    %14 = vector.load %arg6[%c0_7, %c0_8] : memref<1x256xf32, #tpu.memory_space<vmem>>, vector<1x256xf32>
    tpu.vector_store %arg6[%c0_7, %c0_8], %13 {strides = array<i32>} : memref<1x256xf32, #tpu.memory_space<vmem>>, vector<1x256xf32>,
    %c0_9 = arith.constant 0 : index
    %c0_10 = arith.constant 0 : index
    %15 = vector.load %arg4[%c0_9, %c0_10] : memref<256x384xf32, #tpu.memory_space<vmem>>, vector<256x384xf32>
    %cst_11 = arith.constant dense<0.000000e+00> : vector<8x384xf32>
    %16 = tpu.matmul %5, %15, %cst_11 {dimension_numbers = #tpu.dot_dimension_numbers<[1], [0], [0], [1], [0, 0, 1, 1], [], []>} : vector<8x256xf32>, vector<256x384xf32>, vector<8x384xf32> -> vector<8x384xf32>
    %c0_12 = arith.constant 0 : index
    %c0_13 = arith.constant 0 : index
    %17 = vector.load %arg7[%c0_12, %c0_13] : memref<1x384xf32, #tpu.memory_space<vmem>>, vector<1x384xf32>
    %18 = math.absf %16 : vector<8x384xf32>
    %cst_14 = arith.constant dense<0.000000e+00> : vector<384xf32>
    %19 = vector.multi_reduction <add>, %18, %cst_14 [0] : vector<8x384xf32> to vector<384xf32>
    %20 = vector.shape_cast %19 : vector<384xf32> to vector<1x384xf32>
    %21 = arith.addf %17, %20 : vector<1x384xf32>
    %c0_15 = arith.constant 0 : index
    %c0_16 = arith.constant 0 : index
    %22 = vector.load %arg7[%c0_15, %c0_16] : memref<1x384xf32, #tpu.memory_space<vmem>>, vector<1x384xf32>
    tpu.vector_store %arg7[%c0_15, %c0_16], %21 {strides = array<i32>} : memref<1x384xf32, #tpu.memory_space<vmem>>, vector<1x384xf32>,
    %c0_i32_17 = arith.constant 0 : i32
    %23 = arith.cmpi eq, %arg1, %c0_i32_17 : i32
    %24 = arith.extui %23 : i1 to i32
    %c0_i32_18 = arith.constant 0 : i32
    %25 = arith.cmpi ne, %24, %c0_i32_18 : i32
    scf.if %25 {
      %c0_19 = arith.constant 0 : index
      %c0_20 = arith.constant 0 : index
      %26 = vector.load %arg6[%c0_19, %c0_20] : memref<1x256xf32, #tpu.memory_space<vmem>>, vector<1x256xf32>
      %27 = vector.shape_cast %26 : vector<1x256xf32> to vector<1x1x256xf32>
      %cst_21 = arith.constant dense<0.000000e+00> : vector<1xf32>
      %28 = vector.multi_reduction <add>, %27, %cst_21 [1, 2] : vector<1x1x256xf32> to vector<1xf32>
      %29 = vector.shape_cast %28 : vector<1xf32> to vector<1x1x1xf32>
      %30 = vector.extract %29[0, 0, 0] : f32 from vector<1x1x1xf32>
      %c0_22 = arith.constant 0 : index
      %c0_23 = arith.constant 0 : index
      %31 = vector.load %arg7[%c0_22, %c0_23] : memref<1x384xf32, #tpu.memory_space<vmem>>, vector<1x384xf32>
      %32 = vector.shape_cast %31 : vector<1x384xf32> to vector<1x1x384xf32>
      %cst_24 = arith.constant dense<0.000000e+00> : vector<1xf32>
      %33 = vector.multi_reduction <add>, %32, %cst_24 [1, 2] : vector<1x1x384xf32> to vector<1xf32>
      %34 = vector.shape_cast %33 : vector<1xf32> to vector<1x1x1xf32>
      %35 = vector.extract %34[0, 0, 0] : f32 from vector<1x1x1xf32>
      %36 = tpu.iota {dimensions = array<i32: 1>} : vector<1x2xi32>
      %c0_i32_25 = arith.constant 0 : i32
      %37 = vector.broadcast %c0_i32_25 : i32 to vector<1x2xi32>
      %38 = arith.cmpi eq, %36, %37 : vector<1x2xi32>
      %39 = vector.broadcast %30 : f32 to vector<1x2xf32>
      %40 = vector.broadcast %35 : f32 to vector<1x2xf32>
      %41 = arith.select %38, %39, %40 : vector<1x2xi1>, vector<1x2xf32>
      %c0_26 = arith.constant 0 : index
      %c0_27 = arith.constant 0 : index
      %c0_28 = arith.constant 0 : index
      %42 = vector.load %arg5[%c0_26, %c0_27, %c0_28] : memref<1x1x2xf32, #tpu.memory_space<vmem>>, vector<1x1x2xf32>
      %43 = vector.shape_cast %42 : vector<1x1x2xf32> to vector<1x2xf32>
      %44 = vector.shape_cast %41 : vector<1x2xf32> to vector<1x1x2xf32>
      tpu.vector_store %arg5[%c0_26, %c0_27, %c0_28], %44 {strides = array<i32>} : memref<1x1x2xf32, #tpu.memory_space<vmem>>, vector<1x1x2xf32>,
    } else {
    }
    return
  }
  func.func @transform_0(%arg0: i32, %arg1: i32) -> (i32, i32) {
    %c1_i32 = arith.constant 1 : i32
    %0 = arith.muli %arg0, %c1_i32 : i32
    %1 = arith.addi %0, %arg1 : i32
    %c0_i32 = arith.constant 0 : i32
    %c0_i32_0 = arith.constant 0 : i32
    return %1, %c0_i32 : i32, i32
  }
  func.func @transform_1(%arg0: i32, %arg1: i32) -> (i32, i32) {
    %c1_i32 = arith.constant 1 : i32
    %0 = arith.muli %arg0, %c1_i32 : i32
    %1 = arith.addi %0, %arg1 : i32
    %c0_i32 = arith.constant 0 : i32
    %c0_i32_0 = arith.constant 0 : i32
    return %1, %c0_i32 : i32, i32
  }
  func.func @transform_2(%arg0: i32, %arg1: i32) -> (i32, i32) {
    %c0_i32 = arith.constant 0 : i32
    %c0_i32_0 = arith.constant 0 : i32
    %c0_i32_1 = arith.constant 0 : i32
    return %c0_i32, %c0_i32_0 : i32, i32
  }
  func.func @transform_3(%arg0: i32, %arg1: i32) -> (i32, i32, i32) {
    %c0_i32 = arith.constant 0 : i32
    %c0_i32_0 = arith.constant 0 : i32
    %c0_i32_1 = arith.constant 0 : i32
    return %arg0, %c0_i32, %c0_i32_0 : i32, i32, i32
  }
}

</mosaic_0001>

<llo_original>
// kernel: rbsformer_loss.1
$region0: #{rbsformer_loss.1}
  #allocation0 [shape = 'u32[]', space=smem, size = 0x4, offset = 0x4, fixed_abs, tag = 'smem constant byte address 0x4 - core index']
  #allocation1 [shape = 'u32[144,128]{1,0:T(1,128)}', space=vmem, size = 0x12000, scoped, tag = 'internal scratch']
  #allocation2 [shape = 'f32[1,256]{1,0:T(1,128)}', space=vmem, size = 0x400, scoped, tag = 'scratch operand']
  #allocation3 [shape = 'f32[1,384]{1,0:T(1,128)}', space=vmem, size = 0x600, scoped, tag = 'scratch operand']
  %s0 = inlined_call_operand.vmem [shape: f32[8,256], index: 0, kind: input, shape index: {}]
  %s1 = inlined_call_operand.vmem [shape: f32[8,256], index: 1, kind: input, shape index: {}]
  %s2 = inlined_call_operand.hbm [shape: f32[256,384], index: 2, kind: input, shape index: {}]
  %s3 = inlined_call_operand.vmem [shape: f32[1,1,2], index: 3, kind: output, shape index: {}]
  %s4 = sld [smem:[#allocation0]]
  $region34: #{rbsformer_loss.1} parent=0
    _
  %s6 = ssub.s32 1, %s4
  %s7 = scalar_select 0, %s6, %s4
  $region1: #{rbsformer_loss.1} parent=0
    #allocation4 [shape = 'u8[393216]{0}', space=vmem, size = 0x60000, scoped, tag = 'input window, operand 2, single buffered']
    #allocation5 [shape = 's32[1]{0}', space=sflag, size = 0x4, scoped, tag = 'scoped memory for rbsformer_loss.1']
    %8 = vsyncpa [#allocation5], 0
    // Predicated region
    $region2: #{rbsformer_loss.1} parent=1 // pred_check
      _
    $region3: #{rbsformer_loss.1} parent=1 // pred_check_branch
      %10 = sbr.rel (0) target = $region5
    $region4: #{rbsformer_loss.1} parent=1 // pred_region
      %s11 = sadd.s32 0, 0
      %p12 = scmp.lt.s32.totalorder %s11, 0
      %s13 = scalar_select %p12, %s11, 0
      %s14 = smul.addr %s13, 2
      %s15 = smul.addr %s14, 8
      %s16 = scalar_lea.vmem %s0, %s15
      %s17 = sadd.s32 0, 0
    $region5: #{rbsformer_loss.1} parent=1 // pred_fallthru
      _
    // Predicated region
    $region6: #{rbsformer_loss.1} parent=1 // pred_check
      _
    $region7: #{rbsformer_loss.1} parent=1 // pred_check_branch
      %19 = sbr.rel (0) target = $region9
    $region8: #{rbsformer_loss.1} parent=1 // pred_region
      %s20 = sadd.s32 0, 0
      %p21 = scmp.lt.s32.totalorder %s20, 0
      %s22 = scalar_select %p21, %s20, 0
      %s23 = smul.addr %s22, 2
      %s24 = smul.addr %s23, 8
      %s25 = scalar_lea.vmem %s1, %s24
      %s26 = sadd.s32 0, 0
    $region9: #{rbsformer_loss.1} parent=1 // pred_fallthru
      _
    // Predicated region
    $region10: #{rbsformer_loss.1} parent=1 // pred_check
      _
    $region11: #{rbsformer_loss.1} parent=1 // pred_check_branch
      %28 = sbr.rel (0) target = $region13
    $region12: #{rbsformer_loss.1} parent=1 // pred_region
      %s30 = ssub.s32 12288, 12288
      %31 = vsyncadd [#allocation5], %s30
      %s32 = sshll.u32 [#allocation4], 4
      %s33 = int_to_ptr.vmem [resolvable:$true] %s32
      %38 = dma.hbm_to_vmem [thread:$0]  %s2, 12288, %s33, [#allocation5], 384, 384, 24
    $region13: #{rbsformer_loss.1} parent=1 // pred_fallthru
      _
    // Predicated region
    $region14: #{rbsformer_loss.1} parent=1 // pred_check
      _
    $region15: #{rbsformer_loss.1} parent=1 // pred_check_branch
      %40 = sbr.rel (0) target = $region17
    $region16: #{rbsformer_loss.1} parent=1 // pred_region
      %41 = dma.done [#allocation5], 12288
    $region17: #{rbsformer_loss.1} parent=1 // pred_fallthru
      _
    %s42 = sadd.s32 0, 0
    %p43 = scmp.lt.s32.totalorder %s42, 0
    %s44 = scalar_select %p43, %s42, 0
    %s45 = smul.addr %s44, 2
    %s46 = smul.addr %s45, 8
    %s47 = scalar_lea.vmem %s0, %s46
    %s48 = sadd.s32 0, 0
    %p49 = scmp.lt.s32.totalorder %s48, 0
    %s50 = scalar_select %p49, %s48, 0
    %s51 = smul.addr %s50, 2
    %s52 = smul.addr %s51, 8
    %s53 = scalar_lea.vmem %s1, %s52
    %s54 = sadd.s32 0, 0
    %p55 = scmp.lt.s32.totalorder %s54, 0
    %s56 = scalar_select %p55, %s54, 0
    %s57 = smul.addr %s56, 2
    %s58 = smul.addr %s57, 8
    %s59 = scalar_lea.vmem %s0, %s58
    %s60 = sadd.s32 0, 0
    %s61 = sadd.s32 0, 0
    %p62 = scmp.lt.s32.totalorder %s61, 0
    %s63 = scalar_select %p62, %s61, 0
    %s64 = smul.addr %s63, 2
    %s65 = smul.addr %s64, 8
    %s66 = scalar_lea.vmem %s1, %s65
    %s67 = sadd.s32 0, 0
    %p68 = scmp.eq.s32.totalorder 0, 0
    // Predicated region
    $region18: #{rbsformer_loss.1} parent=1 // pred_check
      %p69 = pneg %p68
    $region19: #{rbsformer_loss.1} parent=1 // pred_check_branch
      %71 = sbr.rel (%p69) target = $region21
    $region20: #{rbsformer_loss.1} parent=1 // pred_region
      %v72 = vlaneseq
      %vm73 = vcmp.ge.s32.totalorder %v72, 0
      %vm74 = vcmp.lt.s32.totalorder %v72, 256
      %vm75 = vmand %vm73, %vm74
      %76 = vst.msk [vmem:[#allocation2] sm:$0x3] %vm75, 0.0
      %vm77 = vcmp.lt.s32.totalorder %v72, 384
      %vm78 = vmand %vm73, %vm77
      %79 = vst.msk [vmem:[#allocation3] sm:$0x7] %vm78, 0.0
    $region21: #{rbsformer_loss.1} parent=1 // pred_fallthru
      _
    %v80 = vld [vmem:[%s59] sm:$0xff]
    %v81 = vld [vmem:[%s59 + $0x8] sm:$0xff]
    %v82 = vld [vmem:[%s66] sm:$0xff]
    %v83 = vld [vmem:[%s66 + $0x8] sm:$0xff]
    %v84 = vsub.f32 %v80, %v82
    %v85 = vsub.f32 %v81, %v83
    %v86 = vld [vmem:[#allocation2] sm:$0x3]
    %v87 = vmul.f32 %v84, %v84
    %v88 = vmul.f32 %v85, %v85
    %v89 = vadd.f32 %v87, 1.0000001e-06
    %v90 = vadd.f32 %v88, 1.0000001e-06
    %v91 = vrsqrt.pop %v89
    %v92 = vmul.f32 %v89, %v91
    %vm93 = vcmp.eq.f32.partialorder %v89, inf
    %v94 = vsel %vm93, %v89, %v92
    %vm95 = vcmp.eq.f32.partialorder %v89, 0.0
    %v96 = vand.u32 %v89, 2147483648
    %v97 = vsel %vm95, %v96, %v94
    %v98 = vrsqrt.pop %v90
    %v99 = vmul.f32 %v90, %v98
    %vm100 = vcmp.eq.f32.partialorder %v90, inf
    %v101 = vsel %vm100, %v90, %v99
    %vm102 = vcmp.eq.f32.partialorder %v90, 0.0
    %v103 = vand.u32 %v90, 2147483648
    %v104 = vsel %vm102, %v103, %v101
    %v105 = vrot.slane %v97, 4
    %v106 = vadd.f32 %v97, %v105
    %v107 = vrot.slane %v106, 2
    %v108 = vadd.f32 %v106, %v107
    %v109 = vrot.slane %v108, 1
    %v110 = vadd.f32 %v108, %v109
    %v111 = vrot.slane %v104, 4
    %v112 = vadd.f32 %v104, %v111
    %v113 = vrot.slane %v112, 2
    %v114 = vadd.f32 %v112, %v113
    %v115 = vrot.slane %v114, 1
    %v116 = vadd.f32 %v114, %v115
    %v119 = vcombine.low %v110, %v116
    %v121 = vunpack.c.l.s4 1966171168
    %v122 = vunpack.c.0.s8 %v121
    %v123 = vlaneseq
    %v124 = vshrl.u32 %v123, 7
    %v125 = vsub.s32 %v122, %v124
    %v126 = vrot.slane %v119, %v125
    %v128 = vunpack.c.l.s4 1966171168
    %v129 = vunpack.c.0.s8 %v128
    %v130 = vlaneseq
    %v131 = vshrl.u32 %v130, 7
    %v132 = vsub.s32 %v129, %v131
    %v133 = vrot.slane %v126, %v132
    %v135 = vadd.f32 %v86, %v133
    %v136 = vlaneseq
    %vm137 = vcmp.ge.s32.totalorder %v136, 0
    %vm138 = vcmp.lt.s32.totalorder %v136, 256
    %vm139 = vmand %vm137, %vm138
    %140 = vst.msk [vmem:[#allocation2] sm:$0x3] %vm139, %v135
    %v141 = vld [vmem:[#allocation4] sm:$0xff]
    %v142 = vld [vmem:[#allocation4 + $0x8] sm:$0xff]
    %v143 = vld [vmem:[#allocation4 + $0x10] sm:$0xff]
    %v144 = vld [vmem:[#allocation4 + $0x18] sm:$0xff]
    %v145 = vld [vmem:[#allocation4 + $0x20] sm:$0xff]
    %v146 = vld [vmem:[#allocation4 + $0x28] sm:$0xff]
    %v147 = vld [vmem:[#allocation4 + $0x30] sm:$0xff]
    %v148 = vld [vmem:[#allocation4 + $0x38] sm:$0xff]
    %v149 = vld [vmem:[#allocation4 + $0x40] sm:$0xff]
    %v150 = vld [vmem:[#allocation4 + $0x48] sm:$0xff]
    %v151 = vld [vmem:[#allocation4 + $0x50] sm:$0xff]
    %v152 = vld [vmem:[#allocation4 + $0x58] sm:$0xff]
    %v153 = vld [vmem:[#allocation4 + $0x60] sm:$0xff]
    %v154 = vld [vmem:[#allocation4 + $0x68] sm:$0xff]
    %v155 = vld [vmem:[#allocation4 + $0x70] sm:$0xff]
    %v156 = vld [vmem:[#allocation4 + $0x78] sm:$0xff]
    %v157 = vld [vmem:[#allocation4 + $0x80] sm:$0xff]
    %v158 = vld [vmem:[#allocation4 + $0x88] sm:$0xff]
    %v159 = vld [vmem:[#allocation4 + $0x90] sm:$0xff]
    %v160 = vld [vmem:[#allocation4 + $0x98] sm:$0xff]
    %v161 = vld [vmem:[#allocation4 + $0xa0] sm:$0xff]
    %v162 = vld [vmem:[#allocation4 + $0xa8] sm:$0xff]
    %v163 = vld [vmem:[#allocation4 + $0xb0] sm:$0xff]
    %v164 = vld [vmem:[#allocation4 + $0xb8] sm:$0xff]
    %v165 = vld [vmem:[#allocation4 + $0xc0] sm:$0xff]
    %v166 = vld [vmem:[#allocation4 + $0xc8] sm:$0xff]
    %v167 = vld [vmem:[#allocation4 + $0xd0] sm:$0xff]
    %v168 = vld [vmem:[#allocation4 + $0xd8] sm:$0xff]
    %v169 = vld [vmem:[#allocation4 + $0xe0] sm:$0xff]
    %v170 = vld [vmem:[#allocation4 + $0xe8] sm:$0xff]
    %v171 = vld [vmem:[#allocation4 + $0xf0] sm:$0xff]
    %v172 = vld [vmem:[#allocation4 + $0xf8] sm:$0xff]
    %v173 = vld [vmem:[#allocation4 + $0x100] sm:$0xff]
    %v174 = vld [vmem:[#allocation4 + $0x108] sm:$0xff]
    %v175 = vld [vmem:[#allocation4 + $0x110] sm:$0xff]
    %v176 = vld [vmem:[#allocation4 + $0x118] sm:$0xff]
    %v177 = vld [vmem:[#allocation4 + $0x120] sm:$0xff]
    %v178 = vld [vmem:[#allocation4 + $0x128] sm:$0xff]
    %v179 = vld [vmem:[#allocation4 + $0x130] sm:$0xff]
    %v180 = vld [vmem:[#allocation4 + $0x138] sm:$0xff]
    %v181 = vld [vmem:[#allocation4 + $0x140] sm:$0xff]
    %v182 = vld [vmem:[#allocation4 + $0x148] sm:$0xff]
    %v183 = vld [vmem:[#allocation4 + $0x150] sm:$0xff]
    %v184 = vld [vmem:[#allocation4 + $0x158] sm:$0xff]
    %v185 = vld [vmem:[#allocation4 + $0x160] sm:$0xff]
    %v186 = vld [vmem:[#allocation4 + $0x168] sm:$0xff]
    %v187 = vld [vmem:[#allocation4 + $0x170] sm:$0xff]
    %v188 = vld [vmem:[#allocation4 + $0x178] sm:$0xff]
    %v189 = vld [vmem:[#allocation4 + $0x180] sm:$0xff]
    %v190 = vld [vmem:[#allocation4 + $0x188] sm:$0xff]
    %v191 = vld [vmem:[#allocation4 + $0x190] sm:$0xff]
    %v192 = vld [vmem:[#allocation4 + $0x198] sm:$0xff]
    %v193 = vld [vmem:[#allocation4 + $0x1a0] sm:$0xff]
    %v194 = vld [vmem:[#allocation4 + $0x1a8] sm:$0xff]
    %v195 = vld [vmem:[#allocation4 + $0x1b0] sm:$0xff]
    %v196 = vld [vmem:[#allocation4 + $0x1b8] sm:$0xff]
    %v197 = vld [vmem:[#allocation4 + $0x1c0] sm:$0xff]
    %v198 = vld [vmem:[#allocation4 + $0x1c8] sm:$0xff]
    %v199 = vld [vmem:[#allocation4 + $0x1d0] sm:$0xff]
    %v200 = vld [vmem:[#allocation4 + $0x1d8] sm:$0xff]
    %v201 = vld [vmem:[#allocation4 + $0x1e0] sm:$0xff]
    %v202 = vld [vmem:[#allocation4 + $0x1e8] sm:$0xff]
    %v203 = vld [vmem:[#allocation4 + $0x1f0] sm:$0xff]
    %v204 = vld [vmem:[#allocation4 + $0x1f8] sm:$0xff]
    %v205 = vld [vmem:[#allocation4 + $0x200] sm:$0xff]
    %v206 = vld [vmem:[#allocation4 + $0x208] sm:$0xff]
    %v207 = vld [vmem:[#allocation4 + $0x210] sm:$0xff]
    %v208 = vld [vmem:[#allocation4 + $0x218] sm:$0xff]
    %v209 = vld [vmem:[#allocation4 + $0x220] sm:$0xff]
    %v210 = vld [vmem:[#allocation4 + $0x228] sm:$0xff]
    %v211 = vld [vmem:[#allocation4 + $0x230] sm:$0xff]
    %v212 = vld [vmem:[#allocation4 + $0x238] sm:$0xff]
    %v213 = vld [vmem:[#allocation4 + $0x240] sm:$0xff]
    %v214 = vld [vmem:[#allocation4 + $0x248] sm:$0xff]
    %v215 = vld [vmem:[#allocation4 + $0x250] sm:$0xff]
    %v216 = vld [vmem:[#allocation4 + $0x258] sm:$0xff]
    %v217 = vld [vmem:[#allocation4 + $0x260] sm:$0xff]
    %v218 = vld [vmem:[#allocation4 + $0x268] sm:$0xff]
    %v219 = vld [vmem:[#allocation4 + $0x270] sm:$0xff]
    %v220 = vld [vmem:[#allocation4 + $0x278] sm:$0xff]
    %v221 = vld [vmem:[#allocation4 + $0x280] sm:$0xff]
    %v222 = vld [vmem:[#allocation4 + $0x288] sm:$0xff]
    %v223 = vld [vmem:[#allocation4 + $0x290] sm:$0xff]
    %v224 = vld [vmem:[#allocation4 + $0x298] sm:$0xff]
    %v225 = vld [vmem:[#allocation4 + $0x2a0] sm:$0xff]
    %v226 = vld [vmem:[#allocation4 + $0x2a8] sm:$0xff]
    %v227 = vld [vmem:[#allocation4 + $0x2b0] sm:$0xff]
    %v228 = vld [vmem:[#allocation4 + $0x2b8] sm:$0xff]
    %v229 = vld [vmem:[#allocation4 + $0x2c0] sm:$0xff]
    %v230 = vld [vmem:[#allocation4 + $0x2c8] sm:$0xff]
    %v231 = vld [vmem:[#allocation4 + $0x2d0] sm:$0xff]
    %v232 = vld [vmem:[#allocation4 + $0x2d8] sm:$0xff]
    %v233 = vld [vmem:[#allocation4 + $0x2e0] sm:$0xff]
    %v234 = vld [vmem:[#allocation4 + $0x2e8] sm:$0xff]
    %v235 = vld [vmem:[#allocation4 + $0x2f0] sm:$0xff]
    %v236 = vld [vmem:[#allocation4 + $0x2f8] sm:$0xff]
    %237 = vmatprep.subr.mxu0 %v142
    %238 = vmatpush1.msra.mxu0 %v141
    %239 = vmatprep.subr.mxu0 %v145
    %240 = vmatpush1.msra.mxu0 %v144
    %241 = vmatprep.subr.mxu0 %v148
    %242 = vmatpush1.msra.mxu0 %v147
    %243 = vmatprep.subr.mxu0 %v151
    %244 = vmatpush1.msra.mxu0 %v150
    %245 = vmatprep.subr.mxu0 %v154
    %246 = vmatpush1.msra.mxu0 %v153
    %247 = vmatprep.subr.mxu0 %v157
    %248 = vmatpush1.msra.mxu0 %v156
    %249 = vmatprep.subr.mxu0 %v160
    %250 = vmatpush1.msra.mxu0 %v159
    %251 = vmatprep.subr.mxu0 %v163
    %252 = vmatpush1.msra.mxu0 %v162
    %253 = vmatprep.subr.mxu0 %v166
    %254 = vmatpush1.msra.mxu0 %v165
    %255 = vmatprep.subr.mxu0 %v169
    %256 = vmatpush1.msra.mxu0 %v168
    %257 = vmatprep.subr.mxu0 %v172
    %258 = vmatpush1.msra.mxu0 %v171
    %259 = vmatprep.subr.mxu0 %v175
    %260 = vmatpush1.msra.mxu0 %v174
    %261 = vmatprep.subr.mxu0 %v178
    %262 = vmatpush1.msra.mxu0 %v177
    %263 = vmatprep.subr.mxu0 %v181
    %264 = vmatpush1.msra.mxu0 %v180
    %265 = vmatprep.subr.mxu0 %v184
    %266 = vmatpush1.msra.mxu0 %v183
    %267 = vmatprep.subr.mxu0 %v187
    %268 = vmatpush1.msra.mxu0 %v186
    %269 = vmatprep.subr.mxu0 %v190
    %270 = vmatpush1.msra.mxu0 %v189
    %271 = vmatprep.subr.mxu0 %v193
    %272 = vmatpush1.msra.mxu0 %v192
    %273 = vmatprep.subr.mxu0 %v196
    %274 = vmatpush1.msra.mxu0 %v195
    %275 = vmatprep.subr.mxu0 %v199
    %276 = vmatpush1.msra.mxu0 %v198
    %277 = vmatprep.subr.mxu0 %v202
    %278 = vmatpush1.msra.mxu0 %v201
    %279 = vmatprep.subr.mxu0 %v205
    %280 = vmatpush1.msra.mxu0 %v204
    %281 = vmatprep.subr.mxu0 %v208
    %282 = vmatpush1.msra.mxu0 %v207
    %283 = vmatprep.subr.mxu0 %v211
    %284 = vmatpush1.msra.mxu0 %v210
    %285 = vmatprep.subr.mxu0 %v214
    %286 = vmatpush1.msra.mxu0 %v213
    %287 = vmatprep.subr.mxu0 %v217
    %288 = vmatpush1.msra.mxu0 %v216
    %289 = vmatprep.subr.mxu0 %v220
    %290 = vmatpush1.msra.mxu0 %v219
    %291 = vmatprep.subr.mxu0 %v223
    %292 = vmatpush1.msra.mxu0 %v222
    %293 = vmatprep.subr.mxu0 %v226
    %294 = vmatpush1.msra.mxu0 %v225
    %295 = vmatprep.subr.mxu0 %v229
    %296 = vmatpush1.msra.mxu0 %v228
    %297 = vmatprep.subr.mxu0 %v232
    %298 = vmatpush1.msra.mxu0 %v231
    %299 = vmatprep.subr.mxu0 %v235
    %300 = vmatpush1.msra.mxu0 %v234
    %301 = vmatprep.mubr.f32.mxu0 %v85
    %302 = vmatmul.mubr.f32.gmra.mrb[0].mxu0 %v84
    %v303 = vpop.f32.mrb[0].mxu0
    %v304 = vadd.f32 0.0, %v303
    %v305 = vpop.f32.mrb[0].mxu0
    %v306 = vadd.f32 0.0, %v305
    %307 = vdwg.mxu0
    %308 = vmatprep.subr.mxu0 0.0
    %309 = vmatpush1.msra.mxu0 %v143
    %310 = vmatprep.subr.mxu0 0.0
    %311 = vmatpush1.msra.mxu0 %v146
    %312 = vmatprep.subr.mxu0 0.0
    %313 = vmatpush1.msra.mxu0 %v149
    %314 = vmatprep.subr.mxu0 0.0
    %315 = vmatpush1.msra.mxu0 %v152
    %316 = vmatprep.subr.mxu0 0.0
    %317 = vmatpush1.msra.mxu0 %v155
    %318 = vmatprep.subr.mxu0 0.0
    %319 = vmatpush1.msra.mxu0 %v158
    %320 = vmatprep.subr.mxu0 0.0
    %321 = vmatpush1.msra.mxu0 %v161
    %322 = vmatprep.subr.mxu0 0.0
    %323 = vmatpush1.msra.mxu0 %v164
    %324 = vmatprep.subr.mxu0 0.0
    %325 = vmatpush1.msra.mxu0 %v167
    %326 = vmatprep.subr.mxu0 0.0
    %327 = vmatpush1.msra.mxu0 %v170
    %328 = vmatprep.subr.mxu0 0.0
    %329 = vmatpush1.msra.mxu0 %v173
    %330 = vmatprep.subr.mxu0 0.0
    %331 = vmatpush1.msra.mxu0 %v176
    %332 = vmatprep.subr.mxu0 0.0
    %333 = vmatpush1.msra.mxu0 %v179
    %334 = vmatprep.subr.mxu0 0.0
    %335 = vmatpush1.msra.mxu0 %v182
    %336 = vmatprep.subr.mxu0 0.0
    %337 = vmatpush1.msra.mxu0 %v185
    %338 = vmatprep.subr.mxu0 0.0
    %339 = vmatpush1.msra.mxu0 %v188
    %340 = vmatprep.subr.mxu0 0.0
    %341 = vmatpush1.msra.mxu0 %v191
    %342 = vmatprep.subr.mxu0 0.0
    %343 = vmatpush1.msra.mxu0 %v194
    %344 = vmatprep.subr.mxu0 0.0
    %345 = vmatpush1.msra.mxu0 %v197
    %346 = vmatprep.subr.mxu0 0.0
    %347 = vmatpush1.msra.mxu0 %v200
    %348 = vmatprep.subr.mxu0 0.0
    %349 = vmatpush1.msra.mxu0 %v203
    %350 = vmatprep.subr.mxu0 0.0
    %351 = vmatpush1.msra.mxu0 %v206
    %352 = vmatprep.subr.mxu0 0.0
    %353 = vmatpush1.msra.mxu0 %v209
    %354 = vmatprep.subr.mxu0 0.0
    %355 = vmatpush1.msra.mxu0 %v212
    %356 = vmatprep.subr.mxu0 0.0
    %357 = vmatpush1.msra.mxu0 %v215
    %358 = vmatprep.subr.mxu0 0.0
    %359 = vmatpush1.msra.mxu0 %v218
    %360 = vmatprep.subr.mxu0 0.0
    %361 = vmatpush1.msra.mxu0 %v221
    %362 = vmatprep.subr.mxu0 0.0
    %363 = vmatpush1.msra.mxu0 %v224
    %364 = vmatprep.subr.mxu0 0.0
    %365 = vmatpush1.msra.mxu0 %v227
    %366 = vmatprep.subr.mxu0 0.0
    %367 = vmatpush1.msra.mxu0 %v230
    %368 = vmatprep.subr.mxu0 0.0
    %369 = vmatpush1.msra.mxu0 %v233
    %370 = vmatprep.subr.mxu0 0.0
    %371 = vmatpush1.msra.mxu0 %v236
    %372 = vmatprep.mubr.f32.mxu0 %v85
    %373 = vmatmul.mubr.f32.gmra.mrb[0].mxu0 %v84
    %v374 = vpop.f32.mrb[0].mxu0
    %v375 = vadd.f32 0.0, %v374
    %v376 = vpop.f32.mrb[0].mxu0
    %377 = vdwg.mxu0
    %v378 = vld [vmem:[#allocation3] sm:$0x7]
    %v379 = vand.u32 2147483647, %v304
    %v380 = vand.u32 2147483647, %v306
    %v381 = vand.u32 2147483647, %v375
    %v382 = vrot.slane %v379, 4
    %v383 = vadd.f32 %v379, %v382
    %v384 = vrot.slane %v383, 2
    %v385 = vadd.f32 %v383, %v384
    %v386 = vrot.slane %v385, 1
    %v387 = vadd.f32 %v385, %v386
    %v388 = vrot.slane %v380, 4
    %v389 = vadd.f32 %v380, %v388
    %v390 = vrot.slane %v389, 2
    %v391 = vadd.f32 %v389, %v390
    %v392 = vrot.slane %v391, 1
    %v393 = vadd.f32 %v391, %v392
    %v394 = vrot.slane %v381, 4
    %v395 = vadd.f32 %v381, %v394
    %v396 = vrot.slane %v395, 2
    %v397 = vadd.f32 %v395, %v396
    %v398 = vrot.slane %v397, 1
    %v399 = vadd.f32 %v397, %v398
    %v403 = vcombine.low %v387, %v393
    %v405 = vunpack.c.l.s4 1966171168
    %v406 = vunpack.c.0.s8 %v405
    %v407 = vlaneseq
    %v408 = vshrl.u32 %v407, 7
    %v409 = vsub.s32 %v406, %v408
    %v410 = vrot.slane %v403, %v409
    %v412 = vunpack.c.l.s4 1966171168
    %v413 = vunpack.c.0.s8 %v412
    %v414 = vlaneseq
    %v415 = vshrl.u32 %v414, 7
    %v416 = vsub.s32 %v413, %v415
    %v417 = vrot.slane %v399, %v416
    %v418 = vcombine.low %v410, %v417
    %v420 = vunpack.c.l.s4 1966171168
    %v421 = vunpack.c.0.s8 %v420
    %v422 = vlaneseq
    %v423 = vshrl.u32 %v422, 7
    %v424 = vsub.s32 %v421, %v423
    %v425 = vrot.slane %v418, %v424
    %v427 = vadd.f32 %v378, %v425
    %vm428 = vcmp.lt.s32.totalorder %v136, 384
    %vm429 = vmand %vm137, %vm428
    %430 = vst.msk [vmem:[#allocation3] sm:$0x7] %vm429, %v427
    // Predicated region
    $region22: #{rbsformer_loss.1} parent=1 // pred_check
      %p431 = pneg %p68
    $region23: #{rbsformer_loss.1} parent=1 // pred_check_branch
      %433 = sbr.rel (%p431) target = $region25
    $region24: #{rbsformer_loss.1} parent=1 // pred_region
      %v434 = vld [vmem:[#allocation2] sm:$0x3]
      %v436 = vlaneseq
      %v437 = vshrl.u32 %v436, 7
      %v438 = vsub.s32 0, %v437
      %v439 = vrot.slane %v434, %v438
      %v440 = vlaneseq
      %v441 = vshrl.u32 %v440, 7
      %v442 = vsub.s32 1, %v441
      %v443 = vrot.slane %v434, %v442
      %vm446 = vcmask 1040384
      %v447 = vsel %vm446, %v439, 0.0
      %v448 = vsel %vm446, %v443, 0.0
      %v449 = vadd.f32 %v447, %v448
      %450 = vadd.xlane.f32.xlu0 %v449
      %v451 = vpop.xlane.xlu0 %450
      %v452 = vrot.slane %v451, 4
      %v453 = vadd.f32 %v451, %v452
      %v454 = vrot.slane %v453, 2
      %v455 = vadd.f32 %v453, %v454
      %v456 = vrot.slane %v455, 1
      %v457 = vadd.f32 %v455, %v456
      %s458 = vtos %v457
      %v459 = vld [vmem:[#allocation3] sm:$0x7]
      %v461 = vlaneseq
      %v462 = vshrl.u32 %v461, 7
      %v463 = vsub.s32 0, %v462
      %v464 = vrot.slane %v459, %v463
      %v465 = vlaneseq
      %v466 = vshrl.u32 %v465, 7
      %v467 = vsub.s32 1, %v466
      %v468 = vrot.slane %v459, %v467
      %v469 = vlaneseq
      %v470 = vshrl.u32 %v469, 7
      %v471 = vsub.s32 2, %v470
      %v472 = vrot.slane %v459, %v471
      %v476 = vsel %vm446, %v464, 0.0
      %v477 = vsel %vm446, %v468, 0.0
      %v478 = vadd.f32 %v476, %v477
      %v479 = vsel %vm446, %v472, 0.0
      %v480 = vadd.f32 %v478, %v479
      %481 = vadd.xlane.f32.xlu0 %v480
      %v482 = vpop.xlane.xlu0 %481
      %v483 = vrot.slane %v482, 4
      %v484 = vadd.f32 %v482, %v483
      %v485 = vrot.slane %v484, 2
      %v486 = vadd.f32 %v484, %v485
      %v487 = vrot.slane %v486, 1
      %v488 = vadd.f32 %v486, %v487
      %s489 = vtos %v488
      %v490 = vlaneseq
      %v491 = vand.u32 %v490, 127
      %vm492 = vcmp.eq.s32.totalorder %v491, 0
      %v493 = vstv %s458
      %v494 = vstv %s489
      %v495 = vsel %vm492, %v493, %v494
      %vm496 = vcmask 8192
      %497 = vst.msk [vmem:[%s3] sm:$0x1] %vm496, %v495
    $region25: #{rbsformer_loss.1} parent=1 // pred_fallthru
      _
    // Predicated region
    $region26: #{rbsformer_loss.1} parent=1 // pred_check
      _
    $region27: #{rbsformer_loss.1} parent=1 // pred_check_branch
      %499 = sbr.rel (0) target = $region29
    $region28: #{rbsformer_loss.1} parent=1 // pred_region
      _
    $region29: #{rbsformer_loss.1} parent=1 // pred_fallthru
      _
    // Predicated region
    $region30: #{rbsformer_loss.1} parent=1 // pred_check
      _
    $region31: #{rbsformer_loss.1} parent=1 // pred_check_branch
      %501 = sbr.rel (0) target = $region33
    $region32: #{rbsformer_loss.1} parent=1 // pred_region
      _
    $region33: #{rbsformer_loss.1} parent=1 // pred_fallthru
      _
    %502 = vsyncpa [#allocation5], 1

</llo_original>
